<compile_context>
chip_gen: v5e
topology: v5e:2x2
jax: 0.10.0
libtpu: 0.0.40
codegen_flags: <defaults>
</compile_context>

<pallas_src>
import math

import jax
import jax.numpy as jnp
from jax import lax
from jax.experimental import pallas as pl
from jax.experimental.pallas import tpu as pltpu


def _round_up(x, m):
    return (x + m - 1) // m * m


def _pick_tile(length, target):
    """Largest tile <= target that divides `length` and is sublane friendly
    (multiple of 8); falls back to the full length (always legal for BlockSpec)."""
    t = min(length, target)
    while t > 1 and length % t:
        t -= 1
    if t != length and t % 8:
        t = length
    return t


def _make_kernel(D, Dp, is_layer_norm, compute_dtype, attn_eps=1e-8, ln_eps=1e-5):
    # torch: scores = Q @ K^T / (sqrt(dk) + eps). Fold the scale into Q.
    scale = 1.0 / (math.sqrt(max(1.0, float(D))) + attn_eps)
    inv_d = 1.0 / float(D)

    def layer_norm(z, gamma, beta):
        # Padded lanes [D, Dp) of z are exactly zero by construction, so sums over the
        # full lane width equal sums over the real D lanes; divide by the true D.
        mu = jnp.sum(z, axis=-1, keepdims=True) * inv_d
        ex2 = jnp.sum(z * z, axis=-1, keepdims=True) * inv_d
        var = ex2 - mu * mu
        # gamma/beta are zero-padded -> padded lanes stay exactly zero afterwards.
        return (z - mu) * lax.rsqrt(var + ln_eps) * gamma + beta

    def kernel(q_ref, k_ref, v_ref, w1t_ref, b1_ref, w2t_ref, b2_ref,
               g_ref, bt_ref, o_ref, m_sc, l_sc, acc_sc):
        ki = pl.program_id(2)
        nk = pl.num_programs(2)

        # --- init online-softmax accumulators at the first KV tile ---
        @pl.when(ki == 0)
        def _():
            m_sc[...] = jnp.full(m_sc.shape, -jnp.inf, m_sc.dtype)
            l_sc[...] = jnp.zeros(l_sc.shape, l_sc.dtype)
            acc_sc[...] = jnp.zeros(acc_sc.shape, acc_sc.dtype)

        q32 = q_ref[...].astype(jnp.float32)              # (tq, Dp)
        qc = (q32 * scale).astype(compute_dtype)          # scale folded into Q
        kc = k_ref[...].astype(compute_dtype)              # (tk, Dp)
        vc = v_ref[...].astype(compute_dtype)              # (tk, Dp)

        # scores = q @ k^T via dot_general contracting last dims (no transpose op).
        scores = lax.dot_general(qc, kc, (((1,), (1,)), ((), ())),
                                 preferred_element_type=jnp.float32)   # (tq, tk) f32

        # --- flash-style online softmax accumulation over the Lk grid axis ---
        m_prev = m_sc[...]
        m_new = jnp.maximum(m_prev, jnp.max(scores, axis=-1, keepdims=True))
        alpha = jnp.exp(m_prev - m_new)
        p = jnp.exp(scores - m_new)
        l_sc[...] = alpha * l_sc[...] + jnp.sum(p, axis=-1, keepdims=True)
        acc_sc[...] = alpha * acc_sc[...] + jnp.dot(
            p.astype(compute_dtype), vc, preferred_element_type=jnp.float32)
        m_sc[...] = m_new

        # --- epilogue at the last KV tile: residual, (LN), FFN, residual, (LN) ---
        @pl.when(ki == nk - 1)
        def _():
            inv_l = pl.reciprocal(l_sc[...], approx=True)   # EUP, not a VPU divide
            v_att = acc_sc[...] * inv_l                     # (tq, Dp) f32
            x = q32 + v_att
            g = g_ref[...]
            bt = bt_ref[...]
            if is_layer_norm:
                x = layer_norm(x, g, bt)

            # FFN = linear2(relu(linear1(x))); weights are pre-transposed (in, out),
            # so no .T in the kernel.
            h = jnp.dot(x.astype(compute_dtype), w1t_ref[...],
                        preferred_element_type=jnp.float32) + b1_ref[...]
            h = jnp.maximum(h, 0.0)
            ffn = jnp.dot(h.astype(compute_dtype), w2t_ref[...],
                          preferred_element_type=jnp.float32) + b2_ref[...]

            out = ffn + x
            if is_layer_norm:
                out = layer_norm(out, g, bt)    # same LayerNorm module used twice
            o_ref[...] = out.astype(o_ref.dtype)

    return kernel


def transformer_block(Q, K, V, params, is_layer_norm=False,
                      compute_dtype=jnp.bfloat16, tq_target=256, tk_target=256):
    """Pallas implementation of TransformerBlock.forward.

    Q: (B, Lq, D), K: (B, Lk, D), V: (B, Lk, D) -> (B, Lq, D)
    """
    B, Lq, D = Q.shape
    _, Lk, _ = K.shape
    w1, b1, w2, b2, gamma, beta = params

    # Lane-align the embedding dim (pure zero padding; sliced off at the end).
    Dp = _round_up(D, 128)
    pad_d = Dp - D

    def pad_last(a):
        if pad_d == 0:
            return a
        return jnp.pad(a, [(0, 0)] * (a.ndim - 1) + [(0, pad_d)])

    def pad_weight_t(w):
        # nn.Linear: y = x @ W^T + b -> pass W^T once, zero-padded, in compute dtype.
        wt = w.T
        if pad_d:
            wt = jnp.pad(wt, ((0, pad_d), (0, pad_d)))
        return wt.astype(compute_dtype)

    Qp, Kp, Vp = pad_last(Q), pad_last(K), pad_last(V)
    w1t, w2t = pad_weight_t(w1), pad_weight_t(w2)
    b1p = pad_last(b1).reshape(1, Dp).astype(jnp.float32)
    b2p = pad_last(b2).reshape(1, Dp).astype(jnp.float32)
    gp = pad_last(gamma).reshape(1, Dp).astype(jnp.float32)
    bp = pad_last(beta).reshape(1, Dp).astype(jnp.float32)

    tq = _pick_tile(Lq, tq_target)
    tk = _pick_tile(Lk, tk_target)
    grid = (B, Lq // tq, Lk // tk)

    kernel = _make_kernel(D, Dp, is_layer_norm, compute_dtype)

    q_spec = pl.BlockSpec((pl.Squeezed(), tq, Dp), lambda b, qi, ki: (b, qi, 0))
    kv_spec = pl.BlockSpec((pl.Squeezed(), tk, Dp), lambda b, qi, ki: (b, ki, 0))
    w_spec = pl.BlockSpec((Dp, Dp), lambda b, qi, ki: (0, 0))
    vec_spec = pl.BlockSpec((1, Dp), lambda b, qi, ki: (0, 0))

    out = pl.pallas_call(
        kernel,
        out_shape=jax.ShapeDtypeStruct((B, Lq, Dp), jnp.float32),
        grid=grid,
        in_specs=[
            q_spec,            # Q
            kv_spec,           # K
            kv_spec,           # V
            w_spec,            # W1^T  (bf16 -> halves double-buffered VMEM cost)
            vec_spec,          # b1
            w_spec,            # W2^T
            vec_spec,          # b2
            vec_spec,          # layernorm gamma
            vec_spec,          # layernorm beta
        ],
        out_specs=pl.BlockSpec((pl.Squeezed(), tq, Dp), lambda b, qi, ki: (b, qi, 0)),
        scratch_shapes=[
            pltpu.VMEM((tq, 1), jnp.float32),    # running max m
            pltpu.VMEM((tq, 1), jnp.float32),    # running sum l
            pltpu.VMEM((tq, Dp), jnp.float32),   # output accumulator
        ],
        compiler_params=pltpu.CompilerParams(
            dimension_semantics=("parallel", "parallel", "arbitrary")),
    )(Qp, Kp, Vp, w1t, b1p, w2t, b2p, gp, bp)

    return out[..., :D] if pad_d else out


def init_params(key, D):
    """Deterministic parameter init matching the module shapes.
    linear weights: xavier_normal_; biases: PyTorch default U(-1/sqrt(D), 1/sqrt(D));
    layernorm: gamma=1, beta=0."""
    k1, k2, k3, k4 = jax.random.split(key, 4)
    xavier_std = math.sqrt(2.0 / (D + D))
    w1 = xavier_std * jax.random.normal(k1, (D, D), jnp.float32)
    w2 = xavier_std * jax.random.normal(k2, (D, D), jnp.float32)
    bound = 1.0 / math.sqrt(D)
    b1 = jax.random.uniform(k3, (D,), jnp.float32, -bound, bound)
    b2 = jax.random.uniform(k4, (D,), jnp.float32, -bound, bound)
    gamma = jnp.ones((D,), jnp.float32)
    beta = jnp.zeros((D,), jnp.float32)
    return (w1, b1, w2, b2, gamma, beta)


def transformer_block_ref(Q, K, V, params, is_layer_norm=False, eps=1e-8):
    """Pure-JAX f32 reference mirroring the PyTorch forward (for verification)."""
    w1, b1, w2, b2, gamma, beta = params
    D = Q.shape[-1]
    scores = jnp.einsum("bqd,bkd->bqk", Q, K) / (math.sqrt(max(1.0, D)) + eps)
    p = jax.nn.softmax(scores, axis=-1)
    v_att = jnp.einsum("bqk,bkd->bqd", p, V)

    def ln(z):
        mu = jnp.mean(z, -1, keepdims=True)
        var = jnp.mean((z - mu) ** 2, -1, keepdims=True)
        return (z - mu) / jnp.sqrt(var + 1e-5) * gamma + beta

    x = Q + v_att
    if is_layer_norm:
        x = ln(x)
    ffn = jnp.maximum(x @ w1.T + b1, 0.0) @ w2.T + b2
    out = ffn + x
    if is_layer_norm:
        out = ln(out)
    return out


if __name__ == "__main__":
    B, Lq, Lk, D = 2, 8, 8, 32
    key = jax.random.PRNGKey(0)
    kq, kk, kv, kp = jax.random.split(key, 4)
    Q = jax.random.normal(kq, (B, Lq, D), jnp.float32)
    K = jax.random.normal(kk, (B, Lk, D), jnp.float32)
    V = jax.random.normal(kv, (B, Lk, D), jnp.float32)
    params = init_params(kp, D)

    # (compute_dtype, is_layer_norm, tolerance). f32 path checks exact semantics;
    # bf16 path (the perf-recommended default) gets a looser tolerance since matmul
    # operands are rounded to bf16 (accumulation stays f32).
    configs = [
        (jnp.float32, False, 2e-2),
        (jnp.float32, True, 2e-2),
        (jnp.bfloat16, False, 1.5e-1),
        (jnp.bfloat16, True, 1.5e-1),
    ]
    for cdt, use_ln, tol in configs:
        out = transformer_block(Q, K, V, params, is_layer_norm=use_ln,
                                compute_dtype=cdt)
        out = jax.block_until_ready(out)
        ref = transformer_block_ref(Q, K, V, params, is_layer_norm=use_ln)
        assert out.shape == (B, Lq, D)
        assert jnp.allclose(out, ref, atol=tol, rtol=tol), \
            f"mismatch vs JAX reference (compute_dtype={cdt}, layer_norm={use_ln})"

    print("KERNEL_OK")
</pallas_src>

<mosaic_0001>
module attributes {stable_mosaic.version = 11 : i64} {
  func.func @kernel(%arg0: i32, %arg1: i32, %arg2: i32, %arg3: memref<1x8x128xf32, #tpu.memory_space<vmem>>, %arg4: memref<1x8x128xf32, #tpu.memory_space<vmem>>, %arg5: memref<1x8x128xf32, #tpu.memory_space<vmem>>, %arg6: memref<128x128xf32, #tpu.memory_space<vmem>>, %arg7: memref<1x128xf32, #tpu.memory_space<vmem>>, %arg8: memref<128x128xf32, #tpu.memory_space<vmem>>, %arg9: memref<1x128xf32, #tpu.memory_space<vmem>>, %arg10: memref<1x128xf32, #tpu.memory_space<vmem>>, %arg11: memref<1x128xf32, #tpu.memory_space<vmem>>, %arg12: memref<1x8x128xf32, #tpu.memory_space<vmem>>, %arg13: memref<8x1xf32, #tpu.memory_space<vmem>>, %arg14: memref<8x1xf32, #tpu.memory_space<vmem>>, %arg15: memref<8x128xf32, #tpu.memory_space<vmem>>) attributes {dimension_semantics = [#tpu.dimension_semantics<parallel>, #tpu.dimension_semantics<parallel>, #tpu.dimension_semantics<arbitrary>], iteration_bounds = array<i64: 2, 1, 1>, scalar_prefetch = 0 : i64, scratch_operands = 3 : i64, tpu.core_type = #tpu.core_type<tc>, window_params = [{transform_indices = @transform_0, window_bounds = array<i64: 1, 8, 128>}, {transform_indices = @transform_1, window_bounds = array<i64: 1, 8, 128>}, {transform_indices = @transform_2, window_bounds = array<i64: 1, 8, 128>}, {pipeline_mode = #tpu.pipeline_mode<synchronous>, transform_indices = @transform_3, window_bounds = array<i64: 128, 128>}, {pipeline_mode = #tpu.pipeline_mode<synchronous>, transform_indices = @transform_4, window_bounds = array<i64: 1, 128>}, {pipeline_mode = #tpu.pipeline_mode<synchronous>, transform_indices = @transform_5, window_bounds = array<i64: 128, 128>}, {pipeline_mode = #tpu.pipeline_mode<synchronous>, transform_indices = @transform_6, window_bounds = array<i64: 1, 128>}, {pipeline_mode = #tpu.pipeline_mode<synchronous>, transform_indices = @transform_7, window_bounds = array<i64: 1, 128>}, {pipeline_mode = #tpu.pipeline_mode<synchronous>, transform_indices = @transform_8, window_bounds = array<i64: 1, 128>}, {transform_indices = @transform_9, window_bounds = array<i64: 1, 8, 128>}]} {
    %c0_i32 = arith.constant 0 : i32
    %0 = arith.cmpi eq, %arg2, %c0_i32 : i32
    %1 = arith.extui %0 : i1 to i32
    %c0_i32_0 = arith.constant 0 : i32
    %2 = arith.cmpi ne, %1, %c0_i32_0 : i32
    scf.if %2 {
      %cst_27 = arith.constant 0xFF800000 : f32
      %37 = vector.broadcast %cst_27 : f32 to vector<8x1xf32>
      %c0_28 = arith.constant 0 : index
      %c0_29 = arith.constant 0 : index
      %38 = vector.load %arg13[%c0_28, %c0_29] : memref<8x1xf32, #tpu.memory_space<vmem>>, vector<8x1xf32>
      tpu.vector_store %arg13[%c0_28, %c0_29], %37 {strides = array<i32>} : memref<8x1xf32, #tpu.memory_space<vmem>>, vector<8x1xf32>,
      %cst_30 = arith.constant 0.000000e+00 : f32
      %39 = vector.broadcast %cst_30 : f32 to vector<8x1xf32>
      %c0_31 = arith.constant 0 : index
      %c0_32 = arith.constant 0 : index
      %40 = vector.load %arg14[%c0_31, %c0_32] : memref<8x1xf32, #tpu.memory_space<vmem>>, vector<8x1xf32>
      tpu.vector_store %arg14[%c0_31, %c0_32], %39 {strides = array<i32>} : memref<8x1xf32, #tpu.memory_space<vmem>>, vector<8x1xf32>,
      %cst_33 = arith.constant 0.000000e+00 : f32
      %41 = vector.broadcast %cst_33 : f32 to vector<8x128xf32>
      %c0_34 = arith.constant 0 : index
      %c0_35 = arith.constant 0 : index
      %42 = vector.load %arg15[%c0_34, %c0_35] : memref<8x128xf32, #tpu.memory_space<vmem>>, vector<8x128xf32>
      tpu.vector_store %arg15[%c0_34, %c0_35], %41 {strides = array<i32>} : memref<8x128xf32, #tpu.memory_space<vmem>>, vector<8x128xf32>,
    } else {
    }
    %c0 = arith.constant 0 : index
    %c0_1 = arith.constant 0 : index
    %c0_2 = arith.constant 0 : index
    %3 = vector.load %arg3[%c0, %c0_1, %c0_2] : memref<1x8x128xf32, #tpu.memory_space<vmem>>, vector<1x8x128xf32>
    %4 = vector.shape_cast %3 : vector<1x8x128xf32> to vector<8x128xf32>
    %cst = arith.constant 0.176776692 : f32
    %5 = vector.broadcast %cst : f32 to vector<8x128xf32>
    %6 = arith.mulf %4, %5 : vector<8x128xf32>
    %c0_3 = arith.constant 0 : index
    %c0_4 = arith.constant 0 : index
    %c0_5 = arith.constant 0 : index
    %7 = vector.load %arg4[%c0_3, %c0_4, %c0_5] : memref<1x8x128xf32, #tpu.memory_space<vmem>>, vector<1x8x128xf32>
    %8 = vector.shape_cast %7 : vector<1x8x128xf32> to vector<8x128xf32>
    %c0_6 = arith.constant 0 : index
    %c0_7 = arith.constant 0 : index
    %c0_8 = arith.constant 0 : index
    %9 = vector.load %arg5[%c0_6, %c0_7, %c0_8] : memref<1x8x128xf32, #tpu.memory_space<vmem>>, vector<1x8x128xf32>
    %10 = vector.shape_cast %9 : vector<1x8x128xf32> to vector<8x128xf32>
    %cst_9 = arith.constant dense<0.000000e+00> : vector<8x8xf32>
    %11 = tpu.matmul %6, %8, %cst_9 {dimension_numbers = #tpu.dot_dimension_numbers<[1], [1], [0], [0], [0, 0, 1, 0], [], []>} : vector<8x128xf32>, vector<8x128xf32>, vector<8x8xf32> -> vector<8x8xf32>
    %c0_10 = arith.constant 0 : index
    %c0_11 = arith.constant 0 : index
    %12 = vector.load %arg13[%c0_10, %c0_11] : memref<8x1xf32, #tpu.memory_space<vmem>>, vector<8x1xf32>
    %cst_12 = arith.constant dense<0xFF800000> : vector<8xf32>
    %13 = vector.multi_reduction <maximumf>, %11, %cst_12 [1] : vector<8x8xf32> to vector<8xf32>
    %14 = vector.shape_cast %13 : vector<8xf32> to vector<8x1xf32>
    %15 = arith.maximumf %12, %14 : vector<8x1xf32>
    %16 = arith.subf %12, %15 : vector<8x1xf32>
    %17 = math.exp %16 : vector<8x1xf32>
    %18 = vector.broadcast %15 : vector<8x1xf32> to vector<8x8xf32>
    %19 = arith.subf %11, %18 : vector<8x8xf32>
    %20 = math.exp %19 : vector<8x8xf32>
    %c0_13 = arith.constant 0 : index
    %c0_14 = arith.constant 0 : index
    %21 = vector.load %arg14[%c0_13, %c0_14] : memref<8x1xf32, #tpu.memory_space<vmem>>, vector<8x1xf32>
    %22 = arith.mulf %17, %21 : vector<8x1xf32>
    %cst_15 = arith.constant dense<0.000000e+00> : vector<8xf32>
    %23 = vector.multi_reduction <add>, %20, %cst_15 [1] : vector<8x8xf32> to vector<8xf32>
    %24 = vector.shape_cast %23 : vector<8xf32> to vector<8x1xf32>
    %25 = arith.addf %22, %24 : vector<8x1xf32>
    %c0_16 = arith.constant 0 : index
    %c0_17 = arith.constant 0 : index
    %26 = vector.load %arg14[%c0_16, %c0_17] : memref<8x1xf32, #tpu.memory_space<vmem>>, vector<8x1xf32>
    tpu.vector_store %arg14[%c0_16, %c0_17], %25 {strides = array<i32>} : memref<8x1xf32, #tpu.memory_space<vmem>>, vector<8x1xf32>,
    %c0_18 = arith.constant 0 : index
    %c0_19 = arith.constant 0 : index
    %27 = vector.load %arg15[%c0_18, %c0_19] : memref<8x128xf32, #tpu.memory_space<vmem>>, vector<8x128xf32>
    %28 = vector.broadcast %17 : vector<8x1xf32> to vector<8x128xf32>
    %29 = arith.mulf %28, %27 : vector<8x128xf32>
    %cst_20 = arith.constant dense<0.000000e+00> : vector<8x128xf32>
    %30 = tpu.matmul %20, %10, %cst_20 {dimension_numbers = #tpu.dot_dimension_numbers<[1], [0], [0], [1], [0, 0, 1, 1], [], []>} : vector<8x8xf32>, vector<8x128xf32>, vector<8x128xf32> -> vector<8x128xf32>
    %31 = arith.addf %29, %30 : vector<8x128xf32>
    %c0_21 = arith.constant 0 : index
    %c0_22 = arith.constant 0 : index
    %32 = vector.load %arg15[%c0_21, %c0_22] : memref<8x128xf32, #tpu.memory_space<vmem>>, vector<8x128xf32>
    tpu.vector_store %arg15[%c0_21, %c0_22], %31 {strides = array<i32>} : memref<8x128xf32, #tpu.memory_space<vmem>>, vector<8x128xf32>,
    %c0_23 = arith.constant 0 : index
    %c0_24 = arith.constant 0 : index
    %33 = vector.load %arg13[%c0_23, %c0_24] : memref<8x1xf32, #tpu.memory_space<vmem>>, vector<8x1xf32>
    tpu.vector_store %arg13[%c0_23, %c0_24], %15 {strides = array<i32>} : memref<8x1xf32, #tpu.memory_space<vmem>>, vector<8x1xf32>,
    %c0_i32_25 = arith.constant 0 : i32
    %34 = arith.cmpi eq, %arg2, %c0_i32_25 : i32
    %35 = arith.extui %34 : i1 to i32
    %c0_i32_26 = arith.constant 0 : i32
    %36 = arith.cmpi ne, %35, %c0_i32_26 : i32
    scf.if %36 {
      %c0_27 = arith.constant 0 : index
      %c0_28 = arith.constant 0 : index
      %37 = vector.load %arg14[%c0_27, %c0_28] : memref<8x1xf32, #tpu.memory_space<vmem>>, vector<8x1xf32>
      %38 = tpu.reciprocal %37 {approx = true} : vector<8x1xf32> -> vector<8x1xf32>
      %c0_29 = arith.constant 0 : index
      %c0_30 = arith.constant 0 : index
      %39 = vector.load %arg15[%c0_29, %c0_30] : memref<8x128xf32, #tpu.memory_space<vmem>>, vector<8x128xf32>
      %40 = vector.broadcast %38 : vector<8x1xf32> to vector<8x128xf32>
      %41 = arith.mulf %39, %40 : vector<8x128xf32>
      %42 = arith.addf %4, %41 : vector<8x128xf32>
      %c0_31 = arith.constant 0 : index
      %c0_32 = arith.constant 0 : index
      %43 = vector.load %arg6[%c0_31, %c0_32] : memref<128x128xf32, #tpu.memory_space<vmem>>, vector<128x128xf32>
      %cst_33 = arith.constant dense<0.000000e+00> : vector<8x128xf32>
      %44 = tpu.matmul %42, %43, %cst_33 {dimension_numbers = #tpu.dot_dimension_numbers<[1], [0], [0], [1], [0, 0, 1, 1], [], []>} : vector<8x128xf32>, vector<128x128xf32>, vector<8x128xf32> -> vector<8x128xf32>
      %c0_34 = arith.constant 0 : index
      %c0_35 = arith.constant 0 : index
      %45 = vector.load %arg7[%c0_34, %c0_35] : memref<1x128xf32, #tpu.memory_space<vmem>>, vector<1x128xf32>
      %46 = vector.broadcast %45 : vector<1x128xf32> to vector<8x128xf32>
      %47 = arith.addf %44, %46 : vector<8x128xf32>
      %cst_36 = arith.constant 0.000000e+00 : f32
      %48 = vector.broadcast %cst_36 : f32 to vector<8x128xf32>
      %49 = arith.maximumf %47, %48 : vector<8x128xf32>
      %c0_37 = arith.constant 0 : index
      %c0_38 = arith.constant 0 : index
      %50 = vector.load %arg8[%c0_37, %c0_38] : memref<128x128xf32, #tpu.memory_space<vmem>>, vector<128x128xf32>
      %cst_39 = arith.constant dense<0.000000e+00> : vector<8x128xf32>
      %51 = tpu.matmul %49, %50, %cst_39 {dimension_numbers = #tpu.dot_dimension_numbers<[1], [0], [0], [1], [0, 0, 1, 1], [], []>} : vector<8x128xf32>, vector<128x128xf32>, vector<8x128xf32> -> vector<8x128xf32>
      %c0_40 = arith.constant 0 : index
      %c0_41 = arith.constant 0 : index
      %52 = vector.load %arg9[%c0_40, %c0_41] : memref<1x128xf32, #tpu.memory_space<vmem>>, vector<1x128xf32>
      %53 = vector.broadcast %52 : vector<1x128xf32> to vector<8x128xf32>
      %54 = arith.addf %51, %53 : vector<8x128xf32>
      %55 = arith.addf %54, %42 : vector<8x128xf32>
      %c0_42 = arith.constant 0 : index
      %c0_43 = arith.constant 0 : index
      %c0_44 = arith.constant 0 : index
      %56 = vector.load %arg12[%c0_42, %c0_43, %c0_44] : memref<1x8x128xf32, #tpu.memory_space<vmem>>, vector<1x8x128xf32>
      %57 = vector.shape_cast %56 : vector<1x8x128xf32> to vector<8x128xf32>
      %58 = vector.shape_cast %55 : vector<8x128xf32> to vector<1x8x128xf32>
      tpu.vector_store %arg12[%c0_42, %c0_43, %c0_44], %58 {strides = array<i32>} : memref<1x8x128xf32, #tpu.memory_space<vmem>>, vector<1x8x128xf32>,
    } else {
    }
    return
  }
  func.func @transform_0(%arg0: i32, %arg1: i32, %arg2: i32) -> (i32, i32, i32) {
    %c0_i32 = arith.constant 0 : i32
    %c0_i32_0 = arith.constant 0 : i32
    return %arg0, %arg1, %c0_i32 : i32, i32, i32
  }
  func.func @transform_1(%arg0: i32, %arg1: i32, %arg2: i32) -> (i32, i32, i32) {
    %c0_i32 = arith.constant 0 : i32
    %c0_i32_0 = arith.constant 0 : i32
    return %arg0, %arg2, %c0_i32 : i32, i32, i32
  }
  func.func @transform_2(%arg0: i32, %arg1: i32, %arg2: i32) -> (i32, i32, i32) {
    %c0_i32 = arith.constant 0 : i32
    %c0_i32_0 = arith.constant 0 : i32
    return %arg0, %arg2, %c0_i32 : i32, i32, i32
  }
  func.func @transform_3(%arg0: i32, %arg1: i32, %arg2: i32) -> (i32, i32) {
    %c0_i32 = arith.constant 0 : i32
    %c0_i32_0 = arith.constant 0 : i32
    %c0_i32_1 = arith.constant 0 : i32
    return %c0_i32, %c0_i32_0 : i32, i32
  }
  func.func @transform_4(%arg0: i32, %arg1: i32, %arg2: i32) -> (i32, i32) {
    %c0_i32 = arith.constant 0 : i32
    %c0_i32_0 = arith.constant 0 : i32
    %c0_i32_1 = arith.constant 0 : i32
    return %c0_i32, %c0_i32_0 : i32, i32
  }
  func.func @transform_5(%arg0: i32, %arg1: i32, %arg2: i32) -> (i32, i32) {
    %c0_i32 = arith.constant 0 : i32
    %c0_i32_0 = arith.constant 0 : i32
    %c0_i32_1 = arith.constant 0 : i32
    return %c0_i32, %c0_i32_0 : i32, i32
  }
  func.func @transform_6(%arg0: i32, %arg1: i32, %arg2: i32) -> (i32, i32) {
    %c0_i32 = arith.constant 0 : i32
    %c0_i32_0 = arith.constant 0 : i32
    %c0_i32_1 = arith.constant 0 : i32
    return %c0_i32, %c0_i32_0 : i32, i32
  }
  func.func @transform_7(%arg0: i32, %arg1: i32, %arg2: i32) -> (i32, i32) {
    %c0_i32 = arith.constant 0 : i32
    %c0_i32_0 = arith.constant 0 : i32
    %c0_i32_1 = arith.constant 0 : i32
    return %c0_i32, %c0_i32_0 : i32, i32
  }
  func.func @transform_8(%arg0: i32, %arg1: i32, %arg2: i32) -> (i32, i32) {
    %c0_i32 = arith.constant 0 : i32
    %c0_i32_0 = arith.constant 0 : i32
    %c0_i32_1 = arith.constant 0 : i32
    return %c0_i32, %c0_i32_0 : i32, i32
  }
  func.func @transform_9(%arg0: i32, %arg1: i32, %arg2: i32) -> (i32, i32, i32) {
    %c0_i32 = arith.constant 0 : i32
    %c0_i32_0 = arith.constant 0 : i32
    return %arg0, %arg1, %c0_i32 : i32, i32, i32
  }
}

</mosaic_0001>

<llo_original>
// kernel: tpu_custom_call.1
$region0: #{tpu_custom_call.1}
  #allocation0 [shape = 'u32[]', space=smem, size = 0x4, offset = 0x4, fixed_abs, tag = 'smem constant byte address 0x4 - core index']
  #allocation1 [shape = 'u32[72,128]{1,0:T(1,128)}', space=vmem, size = 0x9000, scoped, tag = 'internal scratch']
  #allocation2 [shape = 'f32[8,1]{1,0:T(8,128)}', space=vmem, size = 0x1000, scoped, tag = 'scratch operand']
  #allocation3 [shape = 'f32[8,1]{1,0:T(8,128)}', space=vmem, size = 0x1000, scoped, tag = 'scratch operand']
  #allocation4 [shape = 'f32[8,128]{1,0:T(8,128)}', space=vmem, size = 0x1000, scoped, tag = 'scratch operand']
  %s0 = inlined_call_operand.hbm [shape: f32[2,8,128], index: 0, kind: input, shape index: {}]
  %s1 = inlined_call_operand.hbm [shape: f32[2,8,128], index: 1, kind: input, shape index: {}]
  %s2 = inlined_call_operand.hbm [shape: f32[2,8,128], index: 2, kind: input, shape index: {}]
  %s3 = inlined_call_operand.hbm [shape: f32[128,128], index: 3, kind: input, shape index: {}]
  %s4 = inlined_call_operand.vmem [shape: f32[1,128], index: 4, kind: input, shape index: {}]
  %s5 = inlined_call_operand.hbm [shape: f32[128,128], index: 5, kind: input, shape index: {}]
  %s6 = inlined_call_operand.vmem [shape: f32[1,128], index: 6, kind: input, shape index: {}]
  %s7 = inlined_call_operand.vmem [shape: f32[1,128], index: 7, kind: input, shape index: {}]
  %s8 = inlined_call_operand.vmem [shape: f32[1,128], index: 8, kind: input, shape index: {}]
  %s9 = inlined_call_operand.hbm [shape: f32[2,8,128], index: 9, kind: output, shape index: {}]
  %s10 = sld [smem:[#allocation0]]
  $region97: #{tpu_custom_call.1} parent=0
    _
  %s12 = ssub.s32 1, %s10
  %s13 = scalar_select 0, %s12, %s10
  $region1: #{tpu_custom_call.1} parent=0
    #allocation5 [shape = 'u8[8192]{0}', space=vmem, size = 0x2000, scoped, tag = 'input window, operand 0']
    #allocation6 [shape = 's32[2]{0}', space=sflag, size = 0x8, scoped, tag = 'scoped memory for tpu_custom_call.1']
    #allocation7 [shape = 's32[2]{0}', space=sflag, size = 0x8, scoped, tag = 'scoped memory for tpu_custom_call.1']
    #allocation8 [shape = 'u8[8192]{0}', space=vmem, size = 0x2000, scoped, tag = 'input window, operand 1']
    #allocation9 [shape = 's32[2]{0}', space=sflag, size = 0x8, scoped, tag = 'scoped memory for tpu_custom_call.1']
    #allocation10 [shape = 'u8[8192]{0}', space=vmem, size = 0x2000, scoped, tag = 'input window, operand 2']
    #allocation11 [shape = 'u8[65536]{0}', space=vmem, size = 0x10000, scoped, tag = 'input window, operand 3, single buffered']
    #allocation12 [shape = 's32[1]{0}', space=sflag, size = 0x4, scoped, tag = 'scoped memory for tpu_custom_call.1']
    #allocation13 [shape = 'u8[65536]{0}', space=vmem, size = 0x10000, scoped, tag = 'input window, operand 5, single buffered']
    #allocation14 [shape = 'u8[8192]{0}', space=vmem, size = 0x2000, scoped, tag = 'output window, operand 0']
    %14 = vsyncpa [#allocation6], 0
    %s15 = scalar_lea.sflag [#allocation6], 1
    %16 = vsyncpa %s15, 0
    %17 = vsyncpa [#allocation9], 0
    %s18 = scalar_lea.sflag [#allocation9], 1
    %19 = vsyncpa %s18, 0
    %20 = vsyncpa [#allocation12], 0
    %21 = vsyncpa [#allocation7], 0
    %s22 = scalar_lea.sflag [#allocation7], 1
    %23 = vsyncpa %s22, 0
    loop: start=0, step=1, limit=4
    $region2: #{tpu_custom_call.1} parent=1 // loop_pre_header
      _
    $region3: #{tpu_custom_call.1} parent=1 // loop_header
      %s25 = sphi 0, %s29
      %p26 = scmp.ge.s32.totalorder %s25, 4
      %s32 = sphi 0, %s51
      %s33 = sphi 0, %s47
      %s34 = sphi 0, %s43
      %s35 = sphi 0, %s32
      %s36 = sphi 0, %s33
      %s37 = sphi 0, %s34
      %s38 = sphi 0, %s35
      %s39 = sphi 0, %s36
      %s40 = sphi 0, %s37
      %s56 = sphi 0, %s58
      %s59 = sphi 0, %s56
      %s60 = sphi 0, %s59
      %s76 = sphi 0, %s60
      %s84 = sphi 0, %s86
      %s87 = sphi 0, %s84
      %s88 = sphi 0, %s87
      %s104 = sphi 0, %s88
      %s112 = sphi 0, %s114
      %s115 = sphi 0, %s112
      %s116 = sphi 0, %s115
      %s132 = sphi 0, %s116
      %s136 = sphi 0, %s136
      %s138 = sphi 0, %s136
      %s139 = sphi 0, %s138
      %s153 = sphi 0, %s139
      %s157 = sphi 0, %s157
      %s159 = sphi 0, %s157
      %s160 = sphi 0, %s159
      %s174 = sphi 0, %s160
      %s178 = sphi 0, %s178
      %s180 = sphi 0, %s178
      %s181 = sphi 0, %s180
      %s195 = sphi 0, %s181
      %s199 = sphi 0, %s199
      %s201 = sphi 0, %s199
      %s202 = sphi 0, %s201
      %s216 = sphi 0, %s202
      %s220 = sphi 0, %s220
      %s222 = sphi 0, %s220
      %s223 = sphi 0, %s222
      %s237 = sphi 0, %s223
      %s241 = sphi 0, %s241
      %s243 = sphi 0, %s241
      %s244 = sphi 0, %s243
      %s258 = sphi 0, %s244
      %s266 = sphi 0, %s268
      %s269 = sphi 0, %s266
      %s270 = sphi 0, %s269
      %s286 = sphi 0, %s270
    $region4: #{tpu_custom_call.1} parent=1 // loop_header_branch
      %28 = sbr.rel (%p26) target = $region8
    $region5: #{tpu_custom_call.1} parent=1 // loop_body
      %s30 = ssub.s32 %s25, 1
      %s31 = ssub.s32 %s25, 2
      %s41 = sadd.s32 1, %s34
      %p42 = scmp.ge.s32.totalorder %s41, 1
      %s43 = scalar_select %p42, 0, %s41
      %s44 = sadd.s32 1, %s33
      %s45 = scalar_select %p42, %s44, %s33
      %p46 = scmp.ge.s32.totalorder %s45, 1
      %s47 = scalar_select %p46, 0, %s45
      %s48 = sadd.s32 1, %s32
      %s49 = scalar_select %p46, %s48, %s32
      %p50 = scmp.ge.s32.totalorder %s49, 2
      %s51 = scalar_select %p50, 0, %s49
      %s52 = ssub.s32 %s32, %s51
      %s53 = ssub.s32 %s33, %s47
      %s54 = sor.u32 %s52, %s53
      %p55 = scmp.eq.s32.totalorder %s54, 0
      %s57 = sadd.s32 %s56, 1
      %s58 = scalar_select %p55, %s56, %s57
      %p61 = pneg %p55
      %p62 = scmp.eq.s32.totalorder %s25, 1
      %p63 = por %p61, %p62
      %p64 = scmp.ne.s32.totalorder %s56, %s59
      %p65 = scmp.eq.s32.totalorder %s25, 0
      %p66 = por %p64, %p65
      %p67 = scmp.ne.s32.totalorder %s56, %s59
      %p68 = scmp.eq.s32.totalorder %s30, 1
      %p69 = por %p67, %p68
      %p70 = scmp.ne.s32.totalorder %s59, %s60
      %p71 = scmp.eq.s32.totalorder %s30, 0
      %p72 = por %p70, %p71
      %p73 = scmp.ne.s32.totalorder %s59, %s60
      %p74 = scmp.eq.s32.totalorder %s31, 1
      %p75 = por %p73, %p74
      %p77 = scmp.ne.s32.totalorder %s60, %s76
      %p78 = scmp.eq.s32.totalorder %s31, 0
      %p79 = por %p77, %p78
      %s80 = ssub.s32 %s32, %s51
      %s81 = ssub.s32 %s34, %s43
      %s82 = sor.u32 %s80, %s81
      %p83 = scmp.eq.s32.totalorder %s82, 0
      %s85 = sadd.s32 %s84, 1
      %s86 = scalar_select %p83, %s84, %s85
      %p89 = pneg %p83
      %p90 = scmp.eq.s32.totalorder %s25, 1
      %p91 = por %p89, %p90
      %p92 = scmp.ne.s32.totalorder %s84, %s87
      %p93 = scmp.eq.s32.totalorder %s25, 0
      %p94 = por %p92, %p93
      %p95 = scmp.ne.s32.totalorder %s84, %s87
      %p96 = scmp.eq.s32.totalorder %s30, 1
      %p97 = por %p95, %p96
      %p98 = scmp.ne.s32.totalorder %s87, %s88
      %p99 = scmp.eq.s32.totalorder %s30, 0
      %p100 = por %p98, %p99
      %p101 = scmp.ne.s32.totalorder %s87, %s88
      %p102 = scmp.eq.s32.totalorder %s31, 1
      %p103 = por %p101, %p102
      %p105 = scmp.ne.s32.totalorder %s88, %s104
      %p106 = scmp.eq.s32.totalorder %s31, 0
      %p107 = por %p105, %p106
      %s108 = ssub.s32 %s32, %s51
      %s109 = ssub.s32 %s34, %s43
      %s110 = sor.u32 %s108, %s109
      %p111 = scmp.eq.s32.totalorder %s110, 0
      %s113 = sadd.s32 %s112, 1
      %s114 = scalar_select %p111, %s112, %s113
      %p117 = pneg %p111
      %p118 = scmp.eq.s32.totalorder %s25, 1
      %p119 = por %p117, %p118
      %p120 = scmp.ne.s32.totalorder %s112, %s115
      %p121 = scmp.eq.s32.totalorder %s25, 0
      %p122 = por %p120, %p121
      %p123 = scmp.ne.s32.totalorder %s112, %s115
      %p124 = scmp.eq.s32.totalorder %s30, 1
      %p125 = por %p123, %p124
      %p126 = scmp.ne.s32.totalorder %s115, %s116
      %p127 = scmp.eq.s32.totalorder %s30, 0
      %p128 = por %p126, %p127
      %p129 = scmp.ne.s32.totalorder %s115, %s116
      %p130 = scmp.eq.s32.totalorder %s31, 1
      %p131 = por %p129, %p130
      %p133 = scmp.ne.s32.totalorder %s116, %s132
      %p134 = scmp.eq.s32.totalorder %s31, 0
      %p135 = por %p133, %p134
      %s137 = sadd.s32 %s136, 1
      %p140 = scmp.eq.s32.totalorder %s25, 1
      %p141 = scmp.ne.s32.totalorder %s136, %s138
      %p142 = scmp.eq.s32.totalorder %s25, 0
      %p143 = por %p141, %p142
      %p144 = scmp.ne.s32.totalorder %s136, %s138
      %p145 = scmp.eq.s32.totalorder %s30, 1
      %p146 = por %p144, %p145
      %p147 = scmp.ne.s32.totalorder %s138, %s139
      %p148 = scmp.eq.s32.totalorder %s30, 0
      %p149 = por %p147, %p148
      %p150 = scmp.ne.s32.totalorder %s138, %s139
      %p151 = scmp.eq.s32.totalorder %s31, 1
      %p152 = por %p150, %p151
      %p154 = scmp.ne.s32.totalorder %s139, %s153
      %p155 = scmp.eq.s32.totalorder %s31, 0
      %p156 = por %p154, %p155
      %s158 = sadd.s32 %s157, 1
      %p161 = scmp.eq.s32.totalorder %s25, 1
      %p162 = scmp.ne.s32.totalorder %s157, %s159
      %p163 = scmp.eq.s32.totalorder %s25, 0
      %p164 = por %p162, %p163
      %p165 = scmp.ne.s32.totalorder %s157, %s159
      %p166 = scmp.eq.s32.totalorder %s30, 1
      %p167 = por %p165, %p166
      %p168 = scmp.ne.s32.totalorder %s159, %s160
      %p169 = scmp.eq.s32.totalorder %s30, 0
      %p170 = por %p168, %p169
      %p171 = scmp.ne.s32.totalorder %s159, %s160
      %p172 = scmp.eq.s32.totalorder %s31, 1
      %p173 = por %p171, %p172
      %p175 = scmp.ne.s32.totalorder %s160, %s174
      %p176 = scmp.eq.s32.totalorder %s31, 0
      %p177 = por %p175, %p176
      %s179 = sadd.s32 %s178, 1
      %p182 = scmp.eq.s32.totalorder %s25, 1
      %p183 = scmp.ne.s32.totalorder %s178, %s180
      %p184 = scmp.eq.s32.totalorder %s25, 0
      %p185 = por %p183, %p184
      %p186 = scmp.ne.s32.totalorder %s178, %s180
      %p187 = scmp.eq.s32.totalorder %s30, 1
      %p188 = por %p186, %p187
      %p189 = scmp.ne.s32.totalorder %s180, %s181
      %p190 = scmp.eq.s32.totalorder %s30, 0
      %p191 = por %p189, %p190
      %p192 = scmp.ne.s32.totalorder %s180, %s181
      %p193 = scmp.eq.s32.totalorder %s31, 1
      %p194 = por %p192, %p193
      %p196 = scmp.ne.s32.totalorder %s181, %s195
      %p197 = scmp.eq.s32.totalorder %s31, 0
      %p198 = por %p196, %p197
      %s200 = sadd.s32 %s199, 1
      %p203 = scmp.eq.s32.totalorder %s25, 1
      %p204 = scmp.ne.s32.totalorder %s199, %s201
      %p205 = scmp.eq.s32.totalorder %s25, 0
      %p206 = por %p204, %p205
      %p207 = scmp.ne.s32.totalorder %s199, %s201
      %p208 = scmp.eq.s32.totalorder %s30, 1
      %p209 = por %p207, %p208
      %p210 = scmp.ne.s32.totalorder %s201, %s202
      %p211 = scmp.eq.s32.totalorder %s30, 0
      %p212 = por %p210, %p211
      %p213 = scmp.ne.s32.totalorder %s201, %s202
      %p214 = scmp.eq.s32.totalorder %s31, 1
      %p215 = por %p213, %p214
      %p217 = scmp.ne.s32.totalorder %s202, %s216
      %p218 = scmp.eq.s32.totalorder %s31, 0
      %p219 = por %p217, %p218
      %s221 = sadd.s32 %s220, 1
      %p224 = scmp.eq.s32.totalorder %s25, 1
      %p225 = scmp.ne.s32.totalorder %s220, %s222
      %p226 = scmp.eq.s32.totalorder %s25, 0
      %p227 = por %p225, %p226
      %p228 = scmp.ne.s32.totalorder %s220, %s222
      %p229 = scmp.eq.s32.totalorder %s30, 1
      %p230 = por %p228, %p229
      %p231 = scmp.ne.s32.totalorder %s222, %s223
      %p232 = scmp.eq.s32.totalorder %s30, 0
      %p233 = por %p231, %p232
      %p234 = scmp.ne.s32.totalorder %s222, %s223
      %p235 = scmp.eq.s32.totalorder %s31, 1
      %p236 = por %p234, %p235
      %p238 = scmp.ne.s32.totalorder %s223, %s237
      %p239 = scmp.eq.s32.totalorder %s31, 0
      %p240 = por %p238, %p239
      %s242 = sadd.s32 %s241, 1
      %p245 = scmp.eq.s32.totalorder %s25, 1
      %p246 = scmp.ne.s32.totalorder %s241, %s243
      %p247 = scmp.eq.s32.totalorder %s25, 0
      %p248 = por %p246, %p247
      %p249 = scmp.ne.s32.totalorder %s241, %s243
      %p250 = scmp.eq.s32.totalorder %s30, 1
      %p251 = por %p249, %p250
      %p252 = scmp.ne.s32.totalorder %s243, %s244
      %p253 = scmp.eq.s32.totalorder %s30, 0
      %p254 = por %p252, %p253
      %p255 = scmp.ne.s32.totalorder %s243, %s244
      %p256 = scmp.eq.s32.totalorder %s31, 1
      %p257 = por %p255, %p256
      %p259 = scmp.ne.s32.totalorder %s244, %s258
      %p260 = scmp.eq.s32.totalorder %s31, 0
      %p261 = por %p259, %p260
      %s262 = ssub.s32 %s32, %s51
      %s263 = ssub.s32 %s33, %s47
      %s264 = sor.u32 %s262, %s263
      %p265 = scmp.eq.s32.totalorder %s264, 0
      %s267 = sadd.s32 %s266, 1
      %s268 = scalar_select %p265, %s266, %s267
      %p271 = pneg %p265
      %p272 = scmp.eq.s32.totalorder %s25, 1
      %p273 = por %p271, %p272
      %p274 = scmp.ne.s32.totalorder %s266, %s269
      %p275 = scmp.eq.s32.totalorder %s25, 0
      %p276 = por %p274, %p275
      %p277 = scmp.ne.s32.totalorder %s266, %s269
      %p278 = scmp.eq.s32.totalorder %s30, 1
      %p279 = por %p277, %p278
      %p280 = scmp.ne.s32.totalorder %s269, %s270
      %p281 = scmp.eq.s32.totalorder %s30, 0
      %p282 = por %p280, %p281
      %p283 = scmp.ne.s32.totalorder %s269, %s270
      %p284 = scmp.eq.s32.totalorder %s31, 1
      %p285 = por %p283, %p284
      %p287 = scmp.ne.s32.totalorder %s270, %s286
      %p288 = scmp.eq.s32.totalorder %s31, 0
      %p289 = por %p287, %p288
      %p290 = scmp.le.s32.totalorder 1, %s25
      %p291 = scmp.lt.s32.totalorder %s25, 3
      %p292 = pnand %p290, %p291
      %p293 = pneg %p292
      // Predicated region
      $region9: #{tpu_custom_call.1} parent=5 // pred_check
        _
      $region10: #{tpu_custom_call.1} parent=5 // pred_check_branch
        %295 = sbr.rel (%p292) target = $region12
      $region11: #{tpu_custom_call.1} parent=5 // pred_region
        %s296 = ssub.s32 %s25, 1
        // Predicated region
        $region13: #{tpu_custom_call.1} parent=11 // pred_check
          %p297 = pneg %p149
        $region14: #{tpu_custom_call.1} parent=11 // pred_check_branch
          %299 = sbr.rel (%p297) target = $region16
        $region15: #{tpu_custom_call.1} parent=11 // pred_region
          %301 = vsyncadd [#allocation12], 0
          %s302 = sshll.u32 %s3, 4
          %s303 = int_to_ptr.hbm [resolvable:$true] %s302
          %s304 = sshll.u32 [#allocation11], 4
          %s305 = int_to_ptr.vmem [resolvable:$true] %s304
          %310 = dma.hbm_to_vmem [thread:$0]  %s303, 2048, %s305, [#allocation12], 128, 128, 8
        $region16: #{tpu_custom_call.1} parent=11 // pred_fallthru
          _
        // Predicated region
        $region17: #{tpu_custom_call.1} parent=11 // pred_check
          %p311 = pneg %p170
        $region18: #{tpu_custom_call.1} parent=11 // pred_check_branch
          %313 = sbr.rel (%p311) target = $region20
        $region19: #{tpu_custom_call.1} parent=11 // pred_region
          _
        $region20: #{tpu_custom_call.1} parent=11 // pred_fallthru
          _
        // Predicated region
        $region21: #{tpu_custom_call.1} parent=11 // pred_check
          %p314 = pneg %p191
        $region22: #{tpu_custom_call.1} parent=11 // pred_check_branch
          %316 = sbr.rel (%p314) target = $region24
        $region23: #{tpu_custom_call.1} parent=11 // pred_region
          %318 = vsyncadd [#allocation12], 0
          %s319 = sshll.u32 %s5, 4
          %s320 = int_to_ptr.hbm [resolvable:$true] %s319
          %s321 = sshll.u32 [#allocation13], 4
          %s322 = int_to_ptr.vmem [resolvable:$true] %s321
          %327 = dma.hbm_to_vmem [thread:$0]  %s320, 2048, %s322, [#allocation12], 128, 128, 8
        $region24: #{tpu_custom_call.1} parent=11 // pred_fallthru
          _
        // Predicated region
        $region25: #{tpu_custom_call.1} parent=11 // pred_check
          %p328 = pneg %p212
        $region26: #{tpu_custom_call.1} parent=11 // pred_check_branch
          %330 = sbr.rel (%p328) target = $region28
        $region27: #{tpu_custom_call.1} parent=11 // pred_region
          _
        $region28: #{tpu_custom_call.1} parent=11 // pred_fallthru
          _
        // Predicated region
        $region29: #{tpu_custom_call.1} parent=11 // pred_check
          %p331 = pneg %p233
        $region30: #{tpu_custom_call.1} parent=11 // pred_check_branch
          %333 = sbr.rel (%p331) target = $region32
        $region31: #{tpu_custom_call.1} parent=11 // pred_region
          _
        $region32: #{tpu_custom_call.1} parent=11 // pred_fallthru
          _
        // Predicated region
        $region33: #{tpu_custom_call.1} parent=11 // pred_check
          %p334 = pneg %p254
        $region34: #{tpu_custom_call.1} parent=11 // pred_check_branch
          %336 = sbr.rel (%p334) target = $region36
        $region35: #{tpu_custom_call.1} parent=11 // pred_region
          _
        $region36: #{tpu_custom_call.1} parent=11 // pred_fallthru
          _
      $region12: #{tpu_custom_call.1} parent=5 // pred_fallthru
        _
      %p337 = scmp.lt.s32.totalorder %s25, 2
      // Predicated region
      $region37: #{tpu_custom_call.1} parent=5 // pred_check
        %p338 = pneg %p337
      $region38: #{tpu_custom_call.1} parent=5 // pred_check_branch
        %340 = sbr.rel (%p338) target = $region40
      $region39: #{tpu_custom_call.1} parent=5 // pred_region
        // Predicated region
        $region41: #{tpu_custom_call.1} parent=39 // pred_check
          %p341 = pneg %p66
        $region42: #{tpu_custom_call.1} parent=39 // pred_check_branch
          %343 = sbr.rel (%p341) target = $region44
        $region43: #{tpu_custom_call.1} parent=39 // pred_region
          %s344 = sand.u32 %s56, 1
          %s345 = scalar_lea.sflag [#allocation6], %s344
          %s346 = sand.u32 %s56, 1
          %s347 = smul.addr %s346, 8
          %s348 = scalar_lea.vmem [#allocation5], %s347
          %350 = vsyncadd %s345, 0
          %s351 = sadd.s32 %s33, %s32
          %s352 = smul.addr %s351, 8
          %s353 = scalar_lea.hbm %s0, %s352
          %s355 = sshll.u32 %s353, 4
          %s356 = int_to_ptr.hbm [resolvable:$true] %s355
          %s357 = sshll.u32 %s348, 4
          %s358 = int_to_ptr.vmem [resolvable:$true] %s357
          %360 = dma.hbm_to_vmem [thread:$0]  %s356, 128, %s358, %s345
        $region44: #{tpu_custom_call.1} parent=39 // pred_fallthru
          _
        // Predicated region
        $region45: #{tpu_custom_call.1} parent=39 // pred_check
          %p361 = pneg %p94
        $region46: #{tpu_custom_call.1} parent=39 // pred_check_branch
          %363 = sbr.rel (%p361) target = $region48
        $region47: #{tpu_custom_call.1} parent=39 // pred_region
          %s364 = sand.u32 %s25, 1
          %s365 = scalar_lea.sflag [#allocation9], %s364
          %s366 = sand.u32 %s84, 1
          %s367 = smul.addr %s366, 8
          %s368 = scalar_lea.vmem [#allocation8], %s367
          %370 = vsyncadd %s365, 0
          %s371 = sadd.s32 %s34, %s32
          %s372 = smul.addr %s371, 8
          %s373 = scalar_lea.hbm %s1, %s372
          %s375 = sshll.u32 %s373, 4
          %s376 = int_to_ptr.hbm [resolvable:$true] %s375
          %s377 = sshll.u32 %s368, 4
          %s378 = int_to_ptr.vmem [resolvable:$true] %s377
          %380 = dma.hbm_to_vmem [thread:$0]  %s376, 128, %s378, %s365
        $region48: #{tpu_custom_call.1} parent=39 // pred_fallthru
          _
        // Predicated region
        $region49: #{tpu_custom_call.1} parent=39 // pred_check
          %p381 = pneg %p122
        $region50: #{tpu_custom_call.1} parent=39 // pred_check_branch
          %383 = sbr.rel (%p381) target = $region52
        $region51: #{tpu_custom_call.1} parent=39 // pred_region
          %s384 = sand.u32 %s25, 1
          %s385 = scalar_lea.sflag [#allocation9], %s384
          %s386 = sand.u32 %s112, 1
          %s387 = smul.addr %s386, 8
          %s388 = scalar_lea.vmem [#allocation10], %s387
          %390 = vsyncadd %s385, 0
          %s391 = sadd.s32 %s34, %s32
          %s392 = smul.addr %s391, 8
          %s393 = scalar_lea.hbm %s2, %s392
          %s395 = sshll.u32 %s393, 4
          %s396 = int_to_ptr.hbm [resolvable:$true] %s395
          %s397 = sshll.u32 %s388, 4
          %s398 = int_to_ptr.vmem [resolvable:$true] %s397
          %400 = dma.hbm_to_vmem [thread:$0]  %s396, 128, %s398, %s385
        $region52: #{tpu_custom_call.1} parent=39 // pred_fallthru
          _
      $region40: #{tpu_custom_call.1} parent=5 // pred_fallthru
        _
      %p401 = scmp.le.s32.totalorder 1, %s25
      %p402 = scmp.lt.s32.totalorder %s25, 3
      %p403 = pnand %p401, %p402
      %p404 = pneg %p403
      // Predicated region
      $region53: #{tpu_custom_call.1} parent=5 // pred_check
        _
      $region54: #{tpu_custom_call.1} parent=5 // pred_check_branch
        %406 = sbr.rel (%p403) target = $region56
      $region55: #{tpu_custom_call.1} parent=5 // pred_region
        %s407 = ssub.s32 %s25, 1
        %s408 = sand.u32 %s59, 1
        %s409 = scalar_lea.sflag [#allocation6], %s408
        %s410 = sand.u32 %s59, 1
        %s411 = smul.addr %s410, 8
        %s412 = scalar_lea.vmem [#allocation5], %s411
        // Predicated region
        $region57: #{tpu_custom_call.1} parent=55 // pred_check
          %p413 = pneg %p72
        $region58: #{tpu_custom_call.1} parent=55 // pred_check_branch
          %415 = sbr.rel (%p413) target = $region60
        $region59: #{tpu_custom_call.1} parent=55 // pred_region
          %417 = dma.done %s409, 128
        $region60: #{tpu_custom_call.1} parent=55 // pred_fallthru
          _
        %s418 = sand.u32 %s30, 1
        %s419 = scalar_lea.sflag [#allocation9], %s418
        %s420 = sand.u32 %s87, 1
        %s421 = smul.addr %s420, 8
        %s422 = scalar_lea.vmem [#allocation8], %s421
        // Predicated region
        $region61: #{tpu_custom_call.1} parent=55 // pred_check
          %p423 = pneg %p100
        $region62: #{tpu_custom_call.1} parent=55 // pred_check_branch
          %425 = sbr.rel (%p423) target = $region64
        $region63: #{tpu_custom_call.1} parent=55 // pred_region
          %427 = dma.done %s419, 128
        $region64: #{tpu_custom_call.1} parent=55 // pred_fallthru
          _
        %s428 = sand.u32 %s30, 1
        %s429 = scalar_lea.sflag [#allocation9], %s428
        %s430 = sand.u32 %s115, 1
        %s431 = smul.addr %s430, 8
        %s432 = scalar_lea.vmem [#allocation10], %s431
        // Predicated region
        $region65: #{tpu_custom_call.1} parent=55 // pred_check
          %p433 = pneg %p128
        $region66: #{tpu_custom_call.1} parent=55 // pred_check_branch
          %435 = sbr.rel (%p433) target = $region68
        $region67: #{tpu_custom_call.1} parent=55 // pred_region
          %437 = dma.done %s429, 128
        $region68: #{tpu_custom_call.1} parent=55 // pred_fallthru
          _
        // Predicated region
        $region69: #{tpu_custom_call.1} parent=55 // pred_check
          %p438 = pneg %p149
        $region70: #{tpu_custom_call.1} parent=55 // pred_check_branch
          %440 = sbr.rel (%p438) target = $region72
        $region71: #{tpu_custom_call.1} parent=55 // pred_region
          %442 = dma.done [#allocation12], 2048
        $region72: #{tpu_custom_call.1} parent=55 // pred_fallthru
          _
        // Predicated region
        $region73: #{tpu_custom_call.1} parent=55 // pred_check
          %p443 = pneg %p191
        $region74: #{tpu_custom_call.1} parent=55 // pred_check_branch
          %445 = sbr.rel (%p443) target = $region76
        $region75: #{tpu_custom_call.1} parent=55 // pred_region
          %447 = dma.done [#allocation12], 2048
        $region76: #{tpu_custom_call.1} parent=55 // pred_fallthru
          _
        %s448 = sand.u32 %s59, 1
        %s449 = scalar_lea.sflag [#allocation6], %s448
        %s450 = sand.u32 %s59, 1
        %s451 = smul.addr %s450, 8
        %s452 = scalar_lea.vmem [#allocation5], %s451
        %p453 = pneg %p72
        %p454 = pneg %p69
        %s455 = sand.u32 %s30, 1
        %s456 = scalar_lea.sflag [#allocation9], %s455
        %s457 = sand.u32 %s87, 1
        %s458 = smul.addr %s457, 8
        %s459 = scalar_lea.vmem [#allocation8], %s458
        %p460 = pneg %p100
        %p461 = pneg %p97
        %s462 = sand.u32 %s30, 1
        %s463 = scalar_lea.sflag [#allocation9], %s462
        %s464 = sand.u32 %s115, 1
        %s465 = smul.addr %s464, 8
        %s466 = scalar_lea.vmem [#allocation10], %s465
        %p467 = pneg %p128
        %p468 = pneg %p125
        %p469 = pneg %p149
        %p470 = pneg %p146
        %p471 = pneg %p170
        %p472 = pneg %p167
        %p473 = pneg %p191
        %p474 = pneg %p188
        %p475 = pneg %p212
        %p476 = pneg %p209
        %p477 = pneg %p233
        %p478 = pneg %p230
        %p479 = pneg %p254
        %p480 = pneg %p251
        %p481 = pneg %p282
        %p482 = pneg %p279
        %s483 = sand.u32 %s269, 1
        %s484 = scalar_lea.sflag [#allocation7], %s483
        %s485 = sand.u32 %s269, 1
        %s486 = smul.addr %s485, 8
        %s487 = scalar_lea.vmem [#allocation14], %s486
        %p488 = scmp.eq.s32.totalorder %s37, 0
        // Predicated region
        $region77: #{tpu_custom_call.1} parent=55 // pred_check
          %p489 = pneg %p488
        $region78: #{tpu_custom_call.1} parent=55 // pred_check_branch
          %491 = sbr.rel (%p489) target = $region80
        $region79: #{tpu_custom_call.1} parent=55 // pred_region
          %vm492 = vcmask 7168
          %493 = vst.msk [vmem:[#allocation2] sm:$0xff] %vm492, -inf
          %494 = vst.msk [vmem:[#allocation3] sm:$0xff] %vm492, 0.0
          %495 = vst [vmem:[#allocation4] sm:$0xff] 0.0
        $region80: #{tpu_custom_call.1} parent=55 // pred_fallthru
          _
        %v496 = vld [vmem:[%s412] sm:$0xff]
        %v497 = vmul.f32 %v496, 0.17677669
        %v498 = vld [vmem:[%s422] sm:$0xff]
        %v499 = vld [vmem:[%s432] sm:$0xff]
        %500 = vmatpush.xpose.msra.mxu0 0.0
        %501 = vmatpush.xpose.msra.mxu0 0.0
        %502 = vmatpush.xpose.msra.mxu0 0.0
        %503 = vmatpush.xpose.msra.mxu0 0.0
        %504 = vmatpush.xpose.msra.mxu0 0.0
        %505 = vmatpush.xpose.msra.mxu0 0.0
        %506 = vmatpush.xpose.msra.mxu0 0.0
        %507 = vmatpush.xpose.msra.mxu0 0.0
        %508 = vmatpush.xpose.msra.mxu0 0.0
        %509 = vmatpush.xpose.msra.mxu0 0.0
        %510 = vmatpush.xpose.msra.mxu0 0.0
        %511 = vmatpush.xpose.msra.mxu0 0.0
        %512 = vmatpush.xpose.msra.mxu0 0.0
        %513 = vmatpush.xpose.msra.mxu0 0.0
        %514 = vmatpush.xpose.msra.mxu0 0.0
        %515 = vmatpush.xpose.msra.mxu0 %v498
        %516 = vmatmul.f32.gmra.mxu0 %v497
        %v517 = vpop.f32.mrf.mxu0
        %v518 = vadd.f32 0.0, %v517
        %519 = vdwg.mxu0
        %v520 = vld [vmem:[#allocation2] sm:$0xff]
        %vm521 = vcmask 64512
        %v522 = vsel %vm521, %v518, -inf
        %523 = vmax.xlane.f32.xlu0 %v522
        %v524 = vpop.xlane.xlu0 %523
        %v525 = vmax.f32 %v520, %v524
        %v526 = vsub.f32 %v520, %v525
        %v527 = vmul.f32 %v526, 1.442695
        %v528 = vpow.pop %v527
        %530 = vset.pattern.permute.xlu0 0
        %531 = vperm.xlu0 %530, %v525
        %v532 = vpop.permute.xlu0 %531
        %v534 = vsub.f32 %v518, %v532
        %v535 = vmul.f32 %v534, 1.442695
        %v536 = vpow.pop %v535
        %v537 = vld [vmem:[#allocation3] sm:$0xff]
        %v538 = vmul.f32 %v528, %v537
        %v539 = vsel %vm521, %v536, 0.0
        %540 = vadd.xlane.f32.xlu0 %v539
        %v541 = vpop.xlane.xlu0 %540
        %v542 = vadd.f32 %v538, %v541
        %vm543 = vcmask 7168
        %544 = vst.msk [vmem:[#allocation3] sm:$0xff] %vm543, %v542
        %v545 = vld [vmem:[#allocation4] sm:$0xff]
        %547 = vset.pattern.permute.xlu0 0
        %548 = vperm.xlu0 %547, %v528
        %v549 = vpop.permute.xlu0 %548
        %v551 = vmul.f32 %v549, %v545
        %v553 = vsel %vm521, %v536, 0
        %555 = vmatpush.msra.mxu0 0.0
        %556 = vmatpush.msra.mxu0 0.0
        %557 = vmatpush.msra.mxu0 0.0
        %558 = vmatpush.msra.mxu0 0.0
        %559 = vmatpush.msra.mxu0 0.0
        %560 = vmatpush.msra.mxu0 0.0
        %561 = vmatpush.msra.mxu0 0.0
        %562 = vmatpush.msra.mxu0 0.0
        %563 = vmatpush.msra.mxu0 0.0
        %564 = vmatpush.msra.mxu0 0.0
        %565 = vmatpush.msra.mxu0 0.0
        %566 = vmatpush.msra.mxu0 0.0
        %567 = vmatpush.msra.mxu0 0.0
        %568 = vmatpush.msra.mxu0 0.0
        %569 = vmatpush.msra.mxu0 0.0
        %570 = vmatpush.msra.mxu0 %v499
        %571 = vmatmul.f32.gmra.mxu0 %v553
        %v572 = vpop.f32.mrf.mxu0
        %v573 = vadd.f32 0.0, %v572
        %574 = vdwg.mxu0
        %v575 = vadd.f32 %v551, %v573
        %576 = vst [vmem:[#allocation4] sm:$0xff] %v575
        %577 = vst.msk [vmem:[#allocation2] sm:$0xff] %vm543, %v525
        // Predicated region
        $region81: #{tpu_custom_call.1} parent=55 // pred_check
          %p578 = pneg %p488
        $region82: #{tpu_custom_call.1} parent=55 // pred_check_branch
          %580 = sbr.rel (%p578) target = $region84
        $region83: #{tpu_custom_call.1} parent=55 // pred_region
          %v581 = vld [vmem:[#allocation3] sm:$0xff]
          %v582 = vrcp.pop %v581
          %v583 = vld [vmem:[#allocation4] sm:$0xff]
          %585 = vset.pattern.permute.xlu0 0
          %586 = vperm.xlu0 %585, %v582
          %v587 = vpop.permute.xlu0 %586
          %v589 = vmul.f32 %v583, %v587
          %v590 = vadd.f32 %v496, %v589
          %v591 = vld [vmem:[#allocation11] sm:$0xff]
          %v592 = vld [vmem:[#allocation11 + $0x8] sm:$0xff]
          %v593 = vld [vmem:[#allocation11 + $0x10] sm:$0xff]
          %v594 = vld [vmem:[#allocation11 + $0x18] sm:$0xff]
          %v595 = vld [vmem:[#allocation11 + $0x20] sm:$0xff]
          %v596 = vld [vmem:[#allocation11 + $0x28] sm:$0xff]
          %v597 = vld [vmem:[#allocation11 + $0x30] sm:$0xff]
          %v598 = vld [vmem:[#allocation11 + $0x38] sm:$0xff]
          %v599 = vld [vmem:[#allocation11 + $0x40] sm:$0xff]
          %v600 = vld [vmem:[#allocation11 + $0x48] sm:$0xff]
          %v601 = vld [vmem:[#allocation11 + $0x50] sm:$0xff]
          %v602 = vld [vmem:[#allocation11 + $0x58] sm:$0xff]
          %v603 = vld [vmem:[#allocation11 + $0x60] sm:$0xff]
          %v604 = vld [vmem:[#allocation11 + $0x68] sm:$0xff]
          %v605 = vld [vmem:[#allocation11 + $0x70] sm:$0xff]
          %v606 = vld [vmem:[#allocation11 + $0x78] sm:$0xff]
          %v607 = vld [vmem:[%s4] sm:$0x1]
          %v609 = vperm.slane %v607, 0
          %611 = vmatpush.msra.mxu0 %v606
          %612 = vmatpush.msra.mxu0 %v605
          %613 = vmatpush.msra.mxu0 %v604
          %614 = vmatpush.msra.mxu0 %v603
          %615 = vmatpush.msra.mxu0 %v602
          %616 = vmatpush.msra.mxu0 %v601
          %617 = vmatpush.msra.mxu0 %v600
          %618 = vmatpush.msra.mxu0 %v599
          %619 = vmatpush.msra.mxu0 %v598
          %620 = vmatpush.msra.mxu0 %v597
          %621 = vmatpush.msra.mxu0 %v596
          %622 = vmatpush.msra.mxu0 %v595
          %623 = vmatpush.msra.mxu0 %v594
          %624 = vmatpush.msra.mxu0 %v593
          %625 = vmatpush.msra.mxu0 %v592
          %626 = vmatpush.msra.mxu0 %v591
          %627 = vmatmul.f32.gmra.mxu0 %v590
          %v628 = vpop.f32.mrf.mxu0
          %v629 = vadd.f32 %v609, %v628
          %630 = vdwg.mxu0
          %v631 = vmax.f32 %v629, 0.0
          %v632 = vld [vmem:[#allocation13] sm:$0xff]
          %v633 = vld [vmem:[#allocation13 + $0x8] sm:$0xff]
          %v634 = vld [vmem:[#allocation13 + $0x10] sm:$0xff]
          %v635 = vld [vmem:[#allocation13 + $0x18] sm:$0xff]
          %v636 = vld [vmem:[#allocation13 + $0x20] sm:$0xff]
          %v637 = vld [vmem:[#allocation13 + $0x28] sm:$0xff]
          %v638 = vld [vmem:[#allocation13 + $0x30] sm:$0xff]
          %v639 = vld [vmem:[#allocation13 + $0x38] sm:$0xff]
          %v640 = vld [vmem:[#allocation13 + $0x40] sm:$0xff]
          %v641 = vld [vmem:[#allocation13 + $0x48] sm:$0xff]
          %v642 = vld [vmem:[#allocation13 + $0x50] sm:$0xff]
          %v643 = vld [vmem:[#allocation13 + $0x58] sm:$0xff]
          %v644 = vld [vmem:[#allocation13 + $0x60] sm:$0xff]
          %v645 = vld [vmem:[#allocation13 + $0x68] sm:$0xff]
          %v646 = vld [vmem:[#allocation13 + $0x70] sm:$0xff]
          %v647 = vld [vmem:[#allocation13 + $0x78] sm:$0xff]
          %v648 = vld [vmem:[%s6] sm:$0x1]
          %v650 = vperm.slane %v648, 0
          %652 = vmatpush.msra.mxu0 %v647
          %653 = vmatpush.msra.mxu0 %v646
          %654 = vmatpush.msra.mxu0 %v645
          %655 = vmatpush.msra.mxu0 %v644
          %656 = vmatpush.msra.mxu0 %v643
          %657 = vmatpush.msra.mxu0 %v642
          %658 = vmatpush.msra.mxu0 %v641
          %659 = vmatpush.msra.mxu0 %v640
          %660 = vmatpush.msra.mxu0 %v639
          %661 = vmatpush.msra.mxu0 %v638
          %662 = vmatpush.msra.mxu0 %v637
          %663 = vmatpush.msra.mxu0 %v636
          %664 = vmatpush.msra.mxu0 %v635
          %665 = vmatpush.msra.mxu0 %v634
          %666 = vmatpush.msra.mxu0 %v633
          %667 = vmatpush.msra.mxu0 %v632
          %668 = vmatmul.f32.gmra.mxu0 %v631
          %v669 = vpop.f32.mrf.mxu0
          %v670 = vadd.f32 %v650, %v669
          %671 = vdwg.mxu0
          %v672 = vadd.f32 %v670, %v590
          %673 = vst [vmem:[%s487] sm:$0xff] %v672
        $region84: #{tpu_custom_call.1} parent=55 // pred_fallthru
          _
        %s674 = sand.u32 %s269, 1
        %s675 = scalar_lea.sflag [#allocation7], %s674
        %s676 = sand.u32 %s269, 1
        %s677 = smul.addr %s676, 8
        %s678 = scalar_lea.vmem [#allocation14], %s677
        // Predicated region
        $region85: #{tpu_custom_call.1} parent=55 // pred_check
          %p679 = pneg %p279
        $region86: #{tpu_custom_call.1} parent=55 // pred_check_branch
          %681 = sbr.rel (%p679) target = $region88
        $region87: #{tpu_custom_call.1} parent=55 // pred_region
          %683 = vsyncadd %s675, 0
          %s684 = sadd.s32 %s36, %s35
          %s685 = smul.addr %s684, 8
          %s686 = scalar_lea.hbm %s9, %s685
          %s688 = sshll.u32 %s678, 4
          %s689 = int_to_ptr.vmem [resolvable:$true] %s688
          %s690 = sshll.u32 %s686, 4
          %s691 = int_to_ptr.hbm [resolvable:$true] %s690
          %693 = dma.vmem_to_hbm [thread:$0]  %s689, 128, %s691, %s675
        $region88: #{tpu_custom_call.1} parent=55 // pred_fallthru
          _
      $region56: #{tpu_custom_call.1} parent=5 // pred_fallthru
        _
      %p694 = scmp.le.s32.totalorder 2, %s25
      // Predicated region
      $region89: #{tpu_custom_call.1} parent=5 // pred_check
        %p695 = pneg %p694
      $region90: #{tpu_custom_call.1} parent=5 // pred_check_branch
        %697 = sbr.rel (%p695) target = $region92
      $region91: #{tpu_custom_call.1} parent=5 // pred_region
        %s698 = ssub.s32 %s25, 2
        // Predicated region
        $region93: #{tpu_custom_call.1} parent=91 // pred_check
          %p699 = pneg %p285
        $region94: #{tpu_custom_call.1} parent=91 // pred_check_branch
          %701 = sbr.rel (%p699) target = $region96
        $region95: #{tpu_custom_call.1} parent=91 // pred_region
          %s702 = sand.u32 %s270, 1
          %s703 = scalar_lea.sflag [#allocation7], %s702
          %s704 = sand.u32 %s270, 1
          %s705 = smul.addr %s704, 8
          %s706 = scalar_lea.vmem [#allocation14], %s705
          %708 = dma.done %s703, 128
        $region96: #{tpu_custom_call.1} parent=91 // pred_fallthru
          _
      $region92: #{tpu_custom_call.1} parent=5 // pred_fallthru
        _
    $region6: #{tpu_custom_call.1} parent=1 // loop_footer
      %s29 = sadd.s32 1, %s25
    $region7: #{tpu_custom_call.1} parent=1 // loop_footer_branch
      %24 = sbr.rel target = $region3
    $region8: #{tpu_custom_call.1} parent=1 // loop_exit
      _
    %709 = vsyncpa [#allocation6], 1
    %s710 = scalar_lea.sflag [#allocation6], 1
    %711 = vsyncpa %s710, 1
    %712 = vsyncpa [#allocation9], 1
    %s713 = scalar_lea.sflag [#allocation9], 1
    %714 = vsyncpa %s713, 1
    %715 = vsyncpa [#allocation12], 1
    %716 = vsyncpa [#allocation7], 1
    %s717 = scalar_lea.sflag [#allocation7], 1
    %718 = vsyncpa %s717, 1

</llo_original>
